<compile_context>
chip_gen: v7x
topology: tpu7x:2x2x1
jax: 0.10.0
libtpu: 0.0.40
codegen_flags: <defaults>
</compile_context>

<pallas_src>
import jax
import jax.numpy as jnp
from jax.experimental import pallas as pl
from jax.experimental.pallas import tpu as pltpu


# Problem sizes (small, consistent with the module's forward signature).
N = 8          # num_samples
X_DIM = 16
Y_DIM = 8
HIDDEN = 32
H2 = 2 * HIDDEN                 # fused (mu | logvar) hidden width = 64
W_ROWS = X_DIM + 2 * H2         # 16 + 64 + 64 = 144 rows in the weight slab


def club_kernel(x_ref, y_ref, w_ref, b_ref, o_ref):
    x = x_ref[...]                      # (N, X_DIM)
    y = y_ref[...]                      # (N, Y_DIM)
    w = w_ref[...]                      # (W_ROWS, H2)
    b = b_ref[...]                      # (3*N, H2)   biases pre-broadcast to N rows

    # Static, sublane-aligned slices of the packed slabs.
    w1 = w[0:X_DIM, :]                      # (X_DIM, H2)   [w1_mu | w1_logvar]
    w2 = w[X_DIM:X_DIM + H2, :]             # (H2, H2)      block-diagonal
    w3 = w[X_DIM + H2:X_DIM + 2 * H2, :]    # (H2, H2)      block-diag, cols >= 2*Y_DIM zero
    b1 = b[0:N, :]
    b2 = b[N:2 * N, :]
    b3 = b[2 * N:3 * N, :]

    # Fused mu/logvar MLP: one 3-matmul chain on the MXU.
    h1 = jnp.maximum(jnp.dot(x, w1, preferred_element_type=jnp.float32) + b1, 0.0)
    h2 = jnp.maximum(jnp.dot(h1, w2, preferred_element_type=jnp.float32) + b2, 0.0)
    h3 = jnp.dot(h2, w3, preferred_element_type=jnp.float32) + b3       # (N, H2)

    mu = h3[:, 0:Y_DIM]                          # (N, Y_DIM)
    logvar = jnp.tanh(h3[:, Y_DIM:2 * Y_DIM])    # (N, Y_DIM)
    inv_var = jnp.exp(-logvar)                   # single EUP transcendental (1/exp(logvar))

    # positive = -0.5 * (mu - y)^2 / exp(logvar)
    positive = -0.5 * (mu - y) ** 2 * inv_var

    # negative = -0.5 * mean_j[(mu_i - y_j)^2] / exp(logvar_i)
    # Closed form: mean_j (mu - y_j)^2 = mu^2 - 2*mu*mean(y) + mean(y^2)
    inv_n = 1.0 / N
    mean_y = jnp.sum(y, axis=0, keepdims=True) * inv_n           # (1, Y_DIM)
    mean_y2 = jnp.sum(y * y, axis=0, keepdims=True) * inv_n      # (1, Y_DIM)
    negative = -0.5 * (mu * mu - 2.0 * mu * mean_y + mean_y2) * inv_var

    # mean_i( sum_d(positive - negative) ) == sum_all / N  -> single scalar in SMEM.
    o_ref[0, 0] = jnp.sum(positive - negative) * inv_n


def club_forward(x, y, w_slab, b_slab):
    vmem = pl.BlockSpec(memory_space=pltpu.MemorySpace.VMEM)
    out = pl.pallas_call(
        club_kernel,
        out_shape=jax.ShapeDtypeStruct((1, 1), jnp.float32),
        in_specs=[vmem, vmem, vmem, vmem],
        out_specs=pl.BlockSpec(memory_space=pltpu.MemorySpace.SMEM),
    )(x, y, w_slab, b_slab)
    return out[0, 0]


def init_params(key, x_dim, y_dim, hidden):
    """Deterministic synthetic init (uniform, roughly PyTorch Linear-like scale).
    Weights stored as (in_features, out_features); biases as (1, out_features)."""
    def linear(k, fan_in, fan_out):
        kw, kb = jax.random.split(k)
        bound = 1.0 / jnp.sqrt(fan_in)
        w = jax.random.uniform(kw, (fan_in, fan_out), jnp.float32, -bound, bound)
        b = jax.random.uniform(kb, (1, fan_out), jnp.float32, -bound, bound)
        return w, b

    keys = jax.random.split(key, 6)
    w1m, b1m = linear(keys[0], x_dim, hidden)
    w2m, b2m = linear(keys[1], hidden, hidden)
    w3m, b3m = linear(keys[2], hidden, y_dim)
    w1v, b1v = linear(keys[3], x_dim, hidden)
    w2v, b2v = linear(keys[4], hidden, hidden)
    w3v, b3v = linear(keys[5], hidden, y_dim)
    return (w1m, b1m, w2m, b2m, w3m, b3m, w1v, b1v, w2v, b2v, w3v, b3v)


def pack_params(params):
    """Pack 12 Linear params into one fused weight slab and one bias slab.

    Weight slab (W_ROWS, H2):
      rows [0, X_DIM)         : [w1_mu | w1_logvar]
      rows [X_DIM, X_DIM+H2)  : block-diag(w2_mu, w2_logvar)
      rows [X_DIM+H2, end)    : block-diag(w3_mu, w3_logvar) zero-padded to H2 cols
    Bias slab (3*N, H2): each bias broadcast to N rows (sublane-aligned slices).
    """
    (w1m, b1m, w2m, b2m, w3m, b3m, w1v, b1v, w2v, b2v, w3v, b3v) = params

    zer_hh = jnp.zeros((HIDDEN, HIDDEN), jnp.float32)
    zer_hy = jnp.zeros((HIDDEN, Y_DIM), jnp.float32)

    W1 = jnp.concatenate([w1m, w1v], axis=1)                       # (X_DIM, H2)
    W2 = jnp.block([[w2m, zer_hh], [zer_hh, w2v]])                 # (H2, H2)
    W3 = jnp.block([[w3m, zer_hy], [zer_hy, w3v]])                 # (H2, 2*Y_DIM)
    W3 = jnp.pad(W3, ((0, 0), (0, H2 - 2 * Y_DIM)))                # (H2, H2)
    w_slab = jnp.concatenate([W1, W2, W3], axis=0)                 # (W_ROWS, H2)

    B1 = jnp.concatenate([b1m, b1v], axis=1)                       # (1, H2)
    B2 = jnp.concatenate([b2m, b2v], axis=1)                       # (1, H2)
    B3 = jnp.pad(jnp.concatenate([b3m, b3v], axis=1),
                 ((0, 0), (0, H2 - 2 * Y_DIM)))                    # (1, H2)
    b_slab = jnp.concatenate([jnp.broadcast_to(B1, (N, H2)),
                              jnp.broadcast_to(B2, (N, H2)),
                              jnp.broadcast_to(B3, (N, H2))], axis=0)  # (3N, H2)
    return w_slab, b_slab


def club_reference(x, y, params):
    """Pure-JAX reference matching the PyTorch forward exactly."""
    (w1m, b1m, w2m, b2m, w3m, b3m, w1v, b1v, w2v, b2v, w3v, b3v) = params

    def mlp(h, w1, b1, w2, b2, w3, b3):
        h = jnp.maximum(h @ w1 + b1, 0.0)
        h = jnp.maximum(h @ w2 + b2, 0.0)
        return h @ w3 + b3

    mu = mlp(x, w1m, b1m, w2m, b2m, w3m, b3m)
    logvar = jnp.tanh(mlp(x, w1v, b1v, w2v, b2v, w3v, b3v))
    positive = -0.5 * (mu - y) ** 2 / jnp.exp(logvar)
    diff = mu[:, None, :] - y[None, :, :]
    negative = -0.5 * jnp.mean(diff ** 2, axis=1) / jnp.exp(logvar)
    return jnp.mean(positive.sum(-1) - negative.sum(-1))


if __name__ == "__main__":
    key = jax.random.PRNGKey(0)
    kx, ky, kp = jax.random.split(key, 3)
    x = jax.random.normal(kx, (N, X_DIM), jnp.float32)
    y = jax.random.normal(ky, (N, Y_DIM), jnp.float32)
    params = init_params(kp, X_DIM, Y_DIM, HIDDEN)
    w_slab, b_slab = pack_params(params)   # one-time packing (module init analogue)

    out = jax.block_until_ready(club_forward(x, y, w_slab, b_slab))
    ref = jax.block_until_ready(club_reference(x, y, params))

    assert jnp.isfinite(out), "kernel produced non-finite output"
    assert jnp.allclose(out, ref, rtol=1e-4, atol=1e-5), (out, ref)
    print("KERNEL_OK")
</pallas_src>

<mosaic_0001>
module attributes {stable_mosaic.version = 11 : i64} {
  func.func @club_kernel(%arg0: memref<8x16xf32, #tpu.memory_space<vmem>>, %arg1: memref<8x8xf32, #tpu.memory_space<vmem>>, %arg2: memref<144x64xf32, #tpu.memory_space<vmem>>, %arg3: memref<24x64xf32, #tpu.memory_space<vmem>>, %arg4: memref<1x1xf32, #tpu.memory_space<smem>>) attributes {dimension_semantics = [], scalar_prefetch = 0 : i64, scratch_operands = 0 : i64, tpu.core_type = #tpu.core_type<tc>} {
    %c0 = arith.constant 0 : index
    %c0_0 = arith.constant 0 : index
    %0 = vector.load %arg0[%c0, %c0_0] : memref<8x16xf32, #tpu.memory_space<vmem>>, vector<8x16xf32>
    %c0_1 = arith.constant 0 : index
    %c0_2 = arith.constant 0 : index
    %1 = vector.load %arg1[%c0_1, %c0_2] : memref<8x8xf32, #tpu.memory_space<vmem>>, vector<8x8xf32>
    %c0_3 = arith.constant 0 : index
    %c0_4 = arith.constant 0 : index
    %2 = vector.load %arg2[%c0_3, %c0_4] : memref<144x64xf32, #tpu.memory_space<vmem>>, vector<144x64xf32>
    %c0_5 = arith.constant 0 : index
    %c0_6 = arith.constant 0 : index
    %3 = vector.load %arg3[%c0_5, %c0_6] : memref<24x64xf32, #tpu.memory_space<vmem>>, vector<24x64xf32>
    %4 = vector.extract_strided_slice %2 {offsets = [0, 0], sizes = [16, 64], strides = [1, 1]} : vector<144x64xf32> to vector<16x64xf32>
    %5 = vector.extract_strided_slice %2 {offsets = [16, 0], sizes = [64, 64], strides = [1, 1]} : vector<144x64xf32> to vector<64x64xf32>
    %6 = vector.extract_strided_slice %2 {offsets = [80, 0], sizes = [64, 64], strides = [1, 1]} : vector<144x64xf32> to vector<64x64xf32>
    %7 = vector.extract_strided_slice %3 {offsets = [0, 0], sizes = [8, 64], strides = [1, 1]} : vector<24x64xf32> to vector<8x64xf32>
    %8 = vector.extract_strided_slice %3 {offsets = [8, 0], sizes = [8, 64], strides = [1, 1]} : vector<24x64xf32> to vector<8x64xf32>
    %9 = vector.extract_strided_slice %3 {offsets = [16, 0], sizes = [8, 64], strides = [1, 1]} : vector<24x64xf32> to vector<8x64xf32>
    %cst = arith.constant dense<0.000000e+00> : vector<8x64xf32>
    %10 = tpu.matmul %0, %4, %cst {dimension_numbers = #tpu.dot_dimension_numbers<[1], [0], [0], [1], [0, 0, 1, 1], [], []>} : vector<8x16xf32>, vector<16x64xf32>, vector<8x64xf32> -> vector<8x64xf32>
    %11 = arith.addf %10, %7 : vector<8x64xf32>
    %cst_7 = arith.constant 0.000000e+00 : f32
    %12 = vector.broadcast %cst_7 : f32 to vector<8x64xf32>
    %13 = arith.maximumf %11, %12 : vector<8x64xf32>
    %cst_8 = arith.constant dense<0.000000e+00> : vector<8x64xf32>
    %14 = tpu.matmul %13, %5, %cst_8 {dimension_numbers = #tpu.dot_dimension_numbers<[1], [0], [0], [1], [0, 0, 1, 1], [], []>} : vector<8x64xf32>, vector<64x64xf32>, vector<8x64xf32> -> vector<8x64xf32>
    %15 = arith.addf %14, %8 : vector<8x64xf32>
    %cst_9 = arith.constant 0.000000e+00 : f32
    %16 = vector.broadcast %cst_9 : f32 to vector<8x64xf32>
    %17 = arith.maximumf %15, %16 : vector<8x64xf32>
    %cst_10 = arith.constant dense<0.000000e+00> : vector<8x64xf32>
    %18 = tpu.matmul %17, %6, %cst_10 {dimension_numbers = #tpu.dot_dimension_numbers<[1], [0], [0], [1], [0, 0, 1, 1], [], []>} : vector<8x64xf32>, vector<64x64xf32>, vector<8x64xf32> -> vector<8x64xf32>
    %19 = arith.addf %18, %9 : vector<8x64xf32>
    %20 = vector.extract_strided_slice %19 {offsets = [0, 0], sizes = [8, 8], strides = [1, 1]} : vector<8x64xf32> to vector<8x8xf32>
    %21 = vector.extract_strided_slice %19 {offsets = [0, 8], sizes = [8, 8], strides = [1, 1]} : vector<8x64xf32> to vector<8x8xf32>
    %22 = math.tanh %21 : vector<8x8xf32>
    %cst_11 = arith.constant 0.000000e+00 : f32
    %23 = vector.broadcast %cst_11 : f32 to vector<8x8xf32>
    %24 = arith.subf %23, %22 : vector<8x8xf32>
    %25 = math.exp %24 : vector<8x8xf32>
    %26 = arith.subf %20, %1 : vector<8x8xf32>
    %27 = arith.mulf %26, %26 : vector<8x8xf32>
    %cst_12 = arith.constant -5.000000e-01 : f32
    %28 = vector.broadcast %cst_12 : f32 to vector<8x8xf32>
    %29 = arith.mulf %28, %27 : vector<8x8xf32>
    %30 = arith.mulf %29, %25 : vector<8x8xf32>
    %cst_13 = arith.constant dense<0.000000e+00> : vector<8xf32>
    %31 = vector.multi_reduction <add>, %1, %cst_13 [0] : vector<8x8xf32> to vector<8xf32>
    %32 = vector.shape_cast %31 : vector<8xf32> to vector<1x8xf32>
    %cst_14 = arith.constant 1.250000e-01 : f32
    %33 = vector.broadcast %cst_14 : f32 to vector<1x8xf32>
    %34 = arith.mulf %32, %33 : vector<1x8xf32>
    %35 = arith.mulf %1, %1 : vector<8x8xf32>
    %cst_15 = arith.constant dense<0.000000e+00> : vector<8xf32>
    %36 = vector.multi_reduction <add>, %35, %cst_15 [0] : vector<8x8xf32> to vector<8xf32>
    %37 = vector.shape_cast %36 : vector<8xf32> to vector<1x8xf32>
    %cst_16 = arith.constant 1.250000e-01 : f32
    %38 = vector.broadcast %cst_16 : f32 to vector<1x8xf32>
    %39 = arith.mulf %37, %38 : vector<1x8xf32>
    %40 = arith.mulf %20, %20 : vector<8x8xf32>
    %cst_17 = arith.constant 2.000000e+00 : f32
    %41 = vector.broadcast %cst_17 : f32 to vector<8x8xf32>
    %42 = arith.mulf %41, %20 : vector<8x8xf32>
    %43 = vector.broadcast %34 : vector<1x8xf32> to vector<8x8xf32>
    %44 = arith.mulf %42, %43 : vector<8x8xf32>
    %45 = arith.subf %40, %44 : vector<8x8xf32>
    %46 = vector.broadcast %39 : vector<1x8xf32> to vector<8x8xf32>
    %47 = arith.addf %45, %46 : vector<8x8xf32>
    %cst_18 = arith.constant -5.000000e-01 : f32
    %48 = vector.broadcast %cst_18 : f32 to vector<8x8xf32>
    %49 = arith.mulf %48, %47 : vector<8x8xf32>
    %50 = arith.mulf %49, %25 : vector<8x8xf32>
    %51 = arith.subf %30, %50 : vector<8x8xf32>
    %52 = vector.shape_cast %51 : vector<8x8xf32> to vector<1x8x8xf32>
    %cst_19 = arith.constant dense<0.000000e+00> : vector<1xf32>
    %53 = vector.multi_reduction <add>, %52, %cst_19 [1, 2] : vector<1x8x8xf32> to vector<1xf32>
    %54 = vector.shape_cast %53 : vector<1xf32> to vector<1x1x1xf32>
    %55 = vector.extract %54[0, 0, 0] : f32 from vector<1x1x1xf32>
    %cst_20 = arith.constant 1.250000e-01 : f32
    %56 = arith.mulf %55, %cst_20 : f32
    %c0_21 = arith.constant 0 : index
    %c0_22 = arith.constant 0 : index
    %57 = memref.load %arg4[%c0_21, %c0_22] : memref<1x1xf32, #tpu.memory_space<smem>>
    memref.store %56, %arg4[%c0_21, %c0_22] : memref<1x1xf32, #tpu.memory_space<smem>>
    return
  }
}

</mosaic_0001>

<llo_original>
// kernel: tpu_custom_call.1
$region0: #{tpu_custom_call.1}
  #allocation0 [shape = 'u32[]', space=smem, size = 0x4, offset = 0x4, fixed_abs, tag = 'smem constant byte address 0x4 - core index']
  #allocation1 [shape = 'u32[144,128]{1,0:T(1,128)}', space=vmem, size = 0x12000, scoped, tag = 'internal scratch']
  %s0 = inlined_call_operand.vmem [shape: f32[8,16], index: 0, kind: input, shape index: {}]
  %s1 = inlined_call_operand.vmem [shape: f32[8,8], index: 1, kind: input, shape index: {}]
  %s2 = inlined_call_operand.vmem [shape: f32[144,64], index: 2, kind: input, shape index: {}]
  %s3 = inlined_call_operand.vmem [shape: f32[24,64], index: 3, kind: input, shape index: {}]
  %s4 = inlined_call_operand.hbm [shape: f32[1,1], index: 4, kind: output, shape index: {}]
  %s5 = sld [smem:[#allocation0]]
  $region26: #{tpu_custom_call.1} parent=0
    _
  %s7 = ssub.s32 1, %s5
  %s8 = scalar_select 0, %s7, %s5
  $region1: #{tpu_custom_call.1} parent=0
    #allocation2 [shape = 'u8[512]{0}', space=smem, size = 0x200, scoped, tag = 'output window, operand 0, single buffered']
    #allocation3 [shape = 's32[1]{0}', space=sflag, size = 0x4, scoped, tag = 'scoped memory for tpu_custom_call.1']
    %9 = vsyncpa [#allocation3], 0
    // Predicated region
    $region2: #{tpu_custom_call.1} parent=1 // pred_check
      _
    $region3: #{tpu_custom_call.1} parent=1 // pred_check_branch
      %11 = sbr.rel (0) target = $region5
    $region4: #{tpu_custom_call.1} parent=1 // pred_region
      _
    $region5: #{tpu_custom_call.1} parent=1 // pred_fallthru
      _
    // Predicated region
    $region6: #{tpu_custom_call.1} parent=1 // pred_check
      _
    $region7: #{tpu_custom_call.1} parent=1 // pred_check_branch
      %13 = sbr.rel (0) target = $region9
    $region8: #{tpu_custom_call.1} parent=1 // pred_region
      _
    $region9: #{tpu_custom_call.1} parent=1 // pred_fallthru
      _
    // Predicated region
    $region10: #{tpu_custom_call.1} parent=1 // pred_check
      _
    $region11: #{tpu_custom_call.1} parent=1 // pred_check_branch
      %15 = sbr.rel (0) target = $region13
    $region12: #{tpu_custom_call.1} parent=1 // pred_region
      _
    $region13: #{tpu_custom_call.1} parent=1 // pred_fallthru
      _
    // Predicated region
    $region14: #{tpu_custom_call.1} parent=1 // pred_check
      _
    $region15: #{tpu_custom_call.1} parent=1 // pred_check_branch
      %17 = sbr.rel (0) target = $region17
    $region16: #{tpu_custom_call.1} parent=1 // pred_region
      _
    $region17: #{tpu_custom_call.1} parent=1 // pred_fallthru
      _
    %v18 = vld [vmem:[%s0] sm:$0xff]
    %v19 = vld [vmem:[%s1] sm:$0xff]
    %v20 = vld [vmem:[%s2] sm:$0xff]
    %v21 = vld [vmem:[%s2 + $0x8] sm:$0xff]
    %v22 = vld [vmem:[%s2 + $0x10] sm:$0xff]
    %v23 = vld [vmem:[%s2 + $0x18] sm:$0xff]
    %v24 = vld [vmem:[%s2 + $0x20] sm:$0xff]
    %v25 = vld [vmem:[%s2 + $0x28] sm:$0xff]
    %v26 = vld [vmem:[%s2 + $0x30] sm:$0xff]
    %v27 = vld [vmem:[%s2 + $0x38] sm:$0xff]
    %v28 = vld [vmem:[%s2 + $0x40] sm:$0xff]
    %v29 = vld [vmem:[%s2 + $0x48] sm:$0xff]
    %v30 = vld [vmem:[%s2 + $0x50] sm:$0xff]
    %v31 = vld [vmem:[%s2 + $0x58] sm:$0xff]
    %v32 = vld [vmem:[%s2 + $0x60] sm:$0xff]
    %v33 = vld [vmem:[%s2 + $0x68] sm:$0xff]
    %v34 = vld [vmem:[%s2 + $0x70] sm:$0xff]
    %v35 = vld [vmem:[%s2 + $0x78] sm:$0xff]
    %v36 = vld [vmem:[%s2 + $0x80] sm:$0xff]
    %v37 = vld [vmem:[%s2 + $0x88] sm:$0xff]
    %v38 = vld [vmem:[%s3] sm:$0xff]
    %v39 = vld [vmem:[%s3 + $0x8] sm:$0xff]
    %v40 = vld [vmem:[%s3 + $0x10] sm:$0xff]
    %vm41 = vcmask 130048
    %v43 = vsel %vm41, %v18, 0
    %45 = vmatprep.subr.mxu0 0.0
    %46 = vmatpush1.msra.mxu0 %v20
    %47 = vmatprep.subr.mxu0 0.0
    %48 = vmatpush1.msra.mxu0 %v21
    %49 = vmatprep.subr.mxu0 0.0
    %50 = vmatpush1.msra.mxu0 0.0
    %51 = vmatprep.subr.mxu0 0.0
    %52 = vmatpush1.msra.mxu0 0.0
    %53 = vmatprep.subr.mxu0 0.0
    %54 = vmatpush1.msra.mxu0 0.0
    %55 = vmatprep.subr.mxu0 0.0
    %56 = vmatpush1.msra.mxu0 0.0
    %57 = vmatprep.subr.mxu0 0.0
    %58 = vmatpush1.msra.mxu0 0.0
    %59 = vmatprep.subr.mxu0 0.0
    %60 = vmatpush1.msra.mxu0 0.0
    %61 = vmatprep.subr.mxu0 0.0
    %62 = vmatpush1.msra.mxu0 0.0
    %63 = vmatprep.subr.mxu0 0.0
    %64 = vmatpush1.msra.mxu0 0.0
    %65 = vmatprep.subr.mxu0 0.0
    %66 = vmatpush1.msra.mxu0 0.0
    %67 = vmatprep.subr.mxu0 0.0
    %68 = vmatpush1.msra.mxu0 0.0
    %69 = vmatprep.subr.mxu0 0.0
    %70 = vmatpush1.msra.mxu0 0.0
    %71 = vmatprep.subr.mxu0 0.0
    %72 = vmatpush1.msra.mxu0 0.0
    %73 = vmatprep.subr.mxu0 0.0
    %74 = vmatpush1.msra.mxu0 0.0
    %75 = vmatprep.subr.mxu0 0.0
    %76 = vmatpush1.msra.mxu0 0.0
    %77 = vmatprep.subr.mxu0 0.0
    %78 = vmatpush1.msra.mxu0 0.0
    %79 = vmatprep.subr.mxu0 0.0
    %80 = vmatpush1.msra.mxu0 0.0
    %81 = vmatprep.subr.mxu0 0.0
    %82 = vmatpush1.msra.mxu0 0.0
    %83 = vmatprep.subr.mxu0 0.0
    %84 = vmatpush1.msra.mxu0 0.0
    %85 = vmatprep.subr.mxu0 0.0
    %86 = vmatpush1.msra.mxu0 0.0
    %87 = vmatprep.subr.mxu0 0.0
    %88 = vmatpush1.msra.mxu0 0.0
    %89 = vmatprep.subr.mxu0 0.0
    %90 = vmatpush1.msra.mxu0 0.0
    %91 = vmatprep.subr.mxu0 0.0
    %92 = vmatpush1.msra.mxu0 0.0
    %93 = vmatprep.subr.mxu0 0.0
    %94 = vmatpush1.msra.mxu0 0.0
    %95 = vmatprep.subr.mxu0 0.0
    %96 = vmatpush1.msra.mxu0 0.0
    %97 = vmatprep.subr.mxu0 0.0
    %98 = vmatpush1.msra.mxu0 0.0
    %99 = vmatprep.subr.mxu0 0.0
    %100 = vmatpush1.msra.mxu0 0.0
    %101 = vmatprep.subr.mxu0 0.0
    %102 = vmatpush1.msra.mxu0 0.0
    %103 = vmatprep.subr.mxu0 0.0
    %104 = vmatpush1.msra.mxu0 0.0
    %105 = vmatprep.subr.mxu0 0.0
    %106 = vmatpush1.msra.mxu0 0.0
    %107 = vmatprep.subr.mxu0 0.0
    %108 = vmatpush1.msra.mxu0 0.0
    %109 = vmatprep.mubr.f32.mxu0 0.0
    %110 = vmatmul.mubr.f32.gmra.mrb[0].mxu0 %v43
    %v111 = vpop.f32.mrb[0].mxu0
    %v112 = vadd.f32 %v38, %v111
    %v113 = vpop.f32.mrb[0].mxu0
    %114 = vdwg.mxu0
    %v115 = vmax.f32 %v112, 0.0
    %vm116 = vcmask 523264
    %v118 = vsel %vm116, %v115, 0
    %120 = vmatprep.subr.mxu0 0.0
    %121 = vmatpush1.msra.mxu0 %v22
    %122 = vmatprep.subr.mxu0 0.0
    %123 = vmatpush1.msra.mxu0 %v23
    %124 = vmatprep.subr.mxu0 0.0
    %125 = vmatpush1.msra.mxu0 %v24
    %126 = vmatprep.subr.mxu0 0.0
    %127 = vmatpush1.msra.mxu0 %v25
    %128 = vmatprep.subr.mxu0 0.0
    %129 = vmatpush1.msra.mxu0 %v26
    %130 = vmatprep.subr.mxu0 0.0
    %131 = vmatpush1.msra.mxu0 %v27
    %132 = vmatprep.subr.mxu0 0.0
    %133 = vmatpush1.msra.mxu0 %v28
    %134 = vmatprep.subr.mxu0 0.0
    %135 = vmatpush1.msra.mxu0 %v29
    %136 = vmatprep.subr.mxu0 0.0
    %137 = vmatpush1.msra.mxu0 0.0
    %138 = vmatprep.subr.mxu0 0.0
    %139 = vmatpush1.msra.mxu0 0.0
    %140 = vmatprep.subr.mxu0 0.0
    %141 = vmatpush1.msra.mxu0 0.0
    %142 = vmatprep.subr.mxu0 0.0
    %143 = vmatpush1.msra.mxu0 0.0
    %144 = vmatprep.subr.mxu0 0.0
    %145 = vmatpush1.msra.mxu0 0.0
    %146 = vmatprep.subr.mxu0 0.0
    %147 = vmatpush1.msra.mxu0 0.0
    %148 = vmatprep.subr.mxu0 0.0
    %149 = vmatpush1.msra.mxu0 0.0
    %150 = vmatprep.subr.mxu0 0.0
    %151 = vmatpush1.msra.mxu0 0.0
    %152 = vmatprep.subr.mxu0 0.0
    %153 = vmatpush1.msra.mxu0 0.0
    %154 = vmatprep.subr.mxu0 0.0
    %155 = vmatpush1.msra.mxu0 0.0
    %156 = vmatprep.subr.mxu0 0.0
    %157 = vmatpush1.msra.mxu0 0.0
    %158 = vmatprep.subr.mxu0 0.0
    %159 = vmatpush1.msra.mxu0 0.0
    %160 = vmatprep.subr.mxu0 0.0
    %161 = vmatpush1.msra.mxu0 0.0
    %162 = vmatprep.subr.mxu0 0.0
    %163 = vmatpush1.msra.mxu0 0.0
    %164 = vmatprep.subr.mxu0 0.0
    %165 = vmatpush1.msra.mxu0 0.0
    %166 = vmatprep.subr.mxu0 0.0
    %167 = vmatpush1.msra.mxu0 0.0
    %168 = vmatprep.subr.mxu0 0.0
    %169 = vmatpush1.msra.mxu0 0.0
    %170 = vmatprep.subr.mxu0 0.0
    %171 = vmatpush1.msra.mxu0 0.0
    %172 = vmatprep.subr.mxu0 0.0
    %173 = vmatpush1.msra.mxu0 0.0
    %174 = vmatprep.subr.mxu0 0.0
    %175 = vmatpush1.msra.mxu0 0.0
    %176 = vmatprep.subr.mxu0 0.0
    %177 = vmatpush1.msra.mxu0 0.0
    %178 = vmatprep.subr.mxu0 0.0
    %179 = vmatpush1.msra.mxu0 0.0
    %180 = vmatprep.subr.mxu0 0.0
    %181 = vmatpush1.msra.mxu0 0.0
    %182 = vmatprep.subr.mxu0 0.0
    %183 = vmatpush1.msra.mxu0 0.0
    %184 = vmatprep.mubr.f32.mxu0 0.0
    %185 = vmatmul.mubr.f32.gmra.mrb[0].mxu0 %v118
    %v186 = vpop.f32.mrb[0].mxu0
    %v187 = vadd.f32 %v39, %v186
    %v188 = vpop.f32.mrb[0].mxu0
    %189 = vdwg.mxu0
    %v190 = vmax.f32 %v187, 0.0
    %v192 = vsel %vm116, %v190, 0
    %194 = vmatprep.subr.mxu0 0.0
    %195 = vmatpush1.msra.mxu0 %v30
    %196 = vmatprep.subr.mxu0 0.0
    %197 = vmatpush1.msra.mxu0 %v31
    %198 = vmatprep.subr.mxu0 0.0
    %199 = vmatpush1.msra.mxu0 %v32
    %200 = vmatprep.subr.mxu0 0.0
    %201 = vmatpush1.msra.mxu0 %v33
    %202 = vmatprep.subr.mxu0 0.0
    %203 = vmatpush1.msra.mxu0 %v34
    %204 = vmatprep.subr.mxu0 0.0
    %205 = vmatpush1.msra.mxu0 %v35
    %206 = vmatprep.subr.mxu0 0.0
    %207 = vmatpush1.msra.mxu0 %v36
    %208 = vmatprep.subr.mxu0 0.0
    %209 = vmatpush1.msra.mxu0 %v37
    %210 = vmatprep.subr.mxu0 0.0
    %211 = vmatpush1.msra.mxu0 0.0
    %212 = vmatprep.subr.mxu0 0.0
    %213 = vmatpush1.msra.mxu0 0.0
    %214 = vmatprep.subr.mxu0 0.0
    %215 = vmatpush1.msra.mxu0 0.0
    %216 = vmatprep.subr.mxu0 0.0
    %217 = vmatpush1.msra.mxu0 0.0
    %218 = vmatprep.subr.mxu0 0.0
    %219 = vmatpush1.msra.mxu0 0.0
    %220 = vmatprep.subr.mxu0 0.0
    %221 = vmatpush1.msra.mxu0 0.0
    %222 = vmatprep.subr.mxu0 0.0
    %223 = vmatpush1.msra.mxu0 0.0
    %224 = vmatprep.subr.mxu0 0.0
    %225 = vmatpush1.msra.mxu0 0.0
    %226 = vmatprep.subr.mxu0 0.0
    %227 = vmatpush1.msra.mxu0 0.0
    %228 = vmatprep.subr.mxu0 0.0
    %229 = vmatpush1.msra.mxu0 0.0
    %230 = vmatprep.subr.mxu0 0.0
    %231 = vmatpush1.msra.mxu0 0.0
    %232 = vmatprep.subr.mxu0 0.0
    %233 = vmatpush1.msra.mxu0 0.0
    %234 = vmatprep.subr.mxu0 0.0
    %235 = vmatpush1.msra.mxu0 0.0
    %236 = vmatprep.subr.mxu0 0.0
    %237 = vmatpush1.msra.mxu0 0.0
    %238 = vmatprep.subr.mxu0 0.0
    %239 = vmatpush1.msra.mxu0 0.0
    %240 = vmatprep.subr.mxu0 0.0
    %241 = vmatpush1.msra.mxu0 0.0
    %242 = vmatprep.subr.mxu0 0.0
    %243 = vmatpush1.msra.mxu0 0.0
    %244 = vmatprep.subr.mxu0 0.0
    %245 = vmatpush1.msra.mxu0 0.0
    %246 = vmatprep.subr.mxu0 0.0
    %247 = vmatpush1.msra.mxu0 0.0
    %248 = vmatprep.subr.mxu0 0.0
    %249 = vmatpush1.msra.mxu0 0.0
    %250 = vmatprep.subr.mxu0 0.0
    %251 = vmatpush1.msra.mxu0 0.0
    %252 = vmatprep.subr.mxu0 0.0
    %253 = vmatpush1.msra.mxu0 0.0
    %254 = vmatprep.subr.mxu0 0.0
    %255 = vmatpush1.msra.mxu0 0.0
    %256 = vmatprep.subr.mxu0 0.0
    %257 = vmatpush1.msra.mxu0 0.0
    %258 = vmatprep.mubr.f32.mxu0 0.0
    %259 = vmatmul.mubr.f32.gmra.mrb[0].mxu0 %v192
    %v260 = vpop.f32.mrb[0].mxu0
    %v261 = vadd.f32 %v40, %v260
    %v262 = vpop.f32.mrb[0].mxu0
    %263 = vdwg.mxu0
    %v264 = vtanh.pop %v261
    %v265 = vsub.f32 0.0, %v264
    %v266 = vmul.f32 %v265, 1.442695
    %v267 = vpow.pop %v266
    %v268 = vsub.f32 %v261, %v19
    %v269 = vmul.f32 %v268, %v268
    %v270 = vmul.f32 %v269, -0.5
    %272 = vrot.lane.b32.xlu0 %v267, 120
    %v273 = vpop.permute.xlu0 %272
    %v275 = vmul.f32 %v270, %v273
    %vm276 = vcmask 64512
    %v277 = vsel %vm276, %v19, 0.0
    %v278 = vrot.slane %v277, 4
    %v279 = vadd.f32 %v277, %v278
    %v280 = vrot.slane %v279, 2
    %v281 = vadd.f32 %v279, %v280
    %v282 = vrot.slane %v281, 1
    %v283 = vadd.f32 %v281, %v282
    %v284 = vmul.f32 %v283, 0.125
    %v285 = vmul.f32 %v19, %v19
    %v286 = vsel %vm276, %v285, 0.0
    %v287 = vrot.slane %v286, 4
    %v288 = vadd.f32 %v286, %v287
    %v289 = vrot.slane %v288, 2
    %v290 = vadd.f32 %v288, %v289
    %v291 = vrot.slane %v290, 1
    %v292 = vadd.f32 %v290, %v291
    %v293 = vmul.f32 %v292, 0.125
    %v294 = vmul.f32 %v261, %v261
    %v295 = vmul.f32 %v261, 2.0
    %v296 = vmul.f32 %v295, %v284
    %v297 = vsub.f32 %v294, %v296
    %v298 = vadd.f32 %v297, %v293
    %v299 = vmul.f32 %v298, -0.5
    %v300 = vmul.f32 %v299, %v273
    %v301 = vsub.f32 %v275, %v300
    %v302 = vsel %vm276, %v301, 0.0
    %303 = vadd.xlane.f32.xlu0 %v302
    %v304 = vpop.xlane.xlu0 %303
    %v305 = vrot.slane %v304, 4
    %v306 = vadd.f32 %v304, %v305
    %v307 = vrot.slane %v306, 2
    %v308 = vadd.f32 %v306, %v307
    %v309 = vrot.slane %v308, 1
    %v310 = vadd.f32 %v308, %v309
    %s311 = vtos %v310
    %s312 = smul.f32 %s311, 0.125
    %s313 = scalar_lea.smem [#allocation2], 0
    %314 = sst [smem:[%s313]] %s312
    // Predicated region
    $region18: #{tpu_custom_call.1} parent=1 // pred_check
      _
    $region19: #{tpu_custom_call.1} parent=1 // pred_check_branch
      %316 = sbr.rel (0) target = $region21
    $region20: #{tpu_custom_call.1} parent=1 // pred_region
      %s318 = ssub.s32 16, 16
      %319 = vsyncadd [#allocation3], %s318
      %322 = dma.smem_to_hbm [#allocation2], 16, %s4, [#allocation3]
    $region21: #{tpu_custom_call.1} parent=1 // pred_fallthru
      _
    // Predicated region
    $region22: #{tpu_custom_call.1} parent=1 // pred_check
      _
    $region23: #{tpu_custom_call.1} parent=1 // pred_check_branch
      %324 = sbr.rel (0) target = $region25
    $region24: #{tpu_custom_call.1} parent=1 // pred_region
      %325 = dma.done [#allocation3], 16
    $region25: #{tpu_custom_call.1} parent=1 // pred_fallthru
      _
    %326 = sfence
    %327 = vsyncpa [#allocation3], 1

</llo_original>
